<compile_context>
chip_gen: v7x
topology: tpu7x:2x2x1
jax: 0.10.0
libtpu: 0.0.40
codegen_flags: <defaults>
</compile_context>

<pallas_src>
import functools

import jax
import jax.numpy as jnp
from jax.experimental import pallas as pl
from jax.experimental.pallas import tpu as pltpu


# ----------------------------- Pallas kernel ------------------------------- #

def _pointwise_conv_kernel(x_ref, w_ref, b_ref, o_ref):
    # x: (Cin, T)  w: (Cout, Cin)  b: (Cout, 1)  o: (Cout, T)
    # K = Cin is tiny (4), but the kernel is HBM-bound, so the small MXU matmul
    # is fine on all generations (a VPU broadcast-FMA would be equivalent).
    acc = jnp.dot(w_ref[...], x_ref[...], preferred_element_type=jnp.float32)
    o_ref[...] = (acc + b_ref[...]).astype(o_ref.dtype)


# ------------------------------ tile selection ------------------------------ #

def _pick_spatial_tile(hw, n, *, max_tile=2048):
    """Largest multiple-of-128 divisor of hw (capped), shrunk so the grid has
    >= 4 steps when possible (megacore sharding on v7x). Falls back to hw."""
    best = None
    t = 128
    while t <= min(hw, max_tile):
        if hw % t == 0:
            best = t
        t += 128
    if best is None:
        return hw                      # block == full dim (still a legal block)
    while (n * (hw // best) < 4 and best % 2 == 0 and best // 2 >= 128
           and hw % (best // 2) == 0):
        best //= 2
    return best


# ------------------------------ JAX wrapper -------------------------------- #

def conv1x1_bias_nchw(x_nchw, w_oc, bias):
    """Pointwise (1x1, stride 1, pad 0) conv + bias, NCHW in / NCHW out.

    x_nchw: (N, Cin, H, W)   w_oc: (Cout, Cin)   bias: (Cout,)
    Returns (N, Cout, H, W) float32.
    """
    N, Cin, H, W = x_nchw.shape
    Cout = w_oc.shape[0]
    HW = H * W

    x = x_nchw.reshape(N, Cin, HW).astype(jnp.float32)    # free reshape
    wmat = w_oc.astype(jnp.float32)                        # (Cout, Cin)
    bcol = bias.astype(jnp.float32).reshape(Cout, 1)       # (Cout, 1)

    T = _pick_spatial_tile(HW, N)
    grid = (N, HW // T)

    flops = 2 * N * HW * Cin * Cout
    bytes_accessed = 4 * (N * Cin * HW + Cin * Cout + Cout + N * Cout * HW)

    y = pl.pallas_call(
        _pointwise_conv_kernel,
        out_shape=jax.ShapeDtypeStruct((N, Cout, HW), jnp.float32),
        grid=grid,
        in_specs=[
            pl.BlockSpec((None, Cin, T), lambda n, t: (n, 0, t)),   # X tile
            pl.BlockSpec((Cout, Cin), lambda n, t: (0, 0)),         # W resident
            pl.BlockSpec((Cout, 1), lambda n, t: (0, 0)),           # bias resident
        ],
        out_specs=pl.BlockSpec((None, Cout, T), lambda n, t: (n, 0, t)),
        compiler_params=pltpu.CompilerParams(
            dimension_semantics=("parallel", "parallel"),
            vmem_limit_bytes=32 * 1024 * 1024,   # footprint is tiny; safe on v5e/v6e/v7x
        ),
        cost_estimate=pl.CostEstimate(
            flops=flops, transcendentals=0, bytes_accessed=bytes_accessed),
    )(x, wmat, bcol)

    return y.reshape(N, Cout, H, W)


def pixel_shuffle_nchw(y, r):
    # y: (N, C*r*r, H, W), channel index = c*r*r + i*r + j (PyTorch ordering)
    N, Crr, H, W = y.shape
    C = Crr // (r * r)
    y = y.reshape(N, C, r, r, H, W)
    y = jnp.transpose(y, (0, 1, 4, 2, 5, 3))   # (N, C, H, i, W, j)
    return y.reshape(N, C, H * r, W * r)


def upsample_forward(x_nchw, w_oihw, bias, *, factor=2):
    """UpSample.forward: feat = proj(x); feat = PixelShuffle(factor)(feat)."""
    w_oc = w_oihw[:, :, 0, 0]                              # (Cout, Cin)
    y = conv1x1_bias_nchw(x_nchw, w_oc, bias)              # (N, C*r*r, H, W)
    return pixel_shuffle_nchw(y, factor)                   # (N, C, H*r, W*r)


# ------------------------- pure-JAX reference check ------------------------- #

def _reference(x_nchw, w_oihw, bias, factor):
    y = jnp.einsum("nchw,oc->nohw", x_nchw, w_oihw[:, :, 0, 0])
    y = y + bias[None, :, None, None]
    N, Crr, H, W = y.shape
    C = Crr // (factor * factor)
    y = y.reshape(N, C, factor, factor, H, W)
    y = jnp.transpose(y, (0, 1, 4, 2, 5, 3))
    return y.reshape(N, C, H * factor, W * factor)


# ---------------------------------- main ------------------------------------ #

if __name__ == "__main__":
    key = jax.random.PRNGKey(0)
    kx, kw, kb = jax.random.split(key, 3)

    N, C, H, W = 2, 4, 16, 16
    factor = 2
    Cout = C * factor * factor

    x = jax.random.normal(kx, (N, C, H, W), jnp.float32)

    # xavier_normal_ on the 1x1 conv weight (gain=1), default Conv2d bias init.
    fan_in, fan_out = C * 1 * 1, Cout * 1 * 1
    std = (2.0 / (fan_in + fan_out)) ** 0.5
    w = std * jax.random.normal(kw, (Cout, C, 1, 1), jnp.float32)
    bound = 1.0 / (fan_in ** 0.5)
    b = jax.random.uniform(kb, (Cout,), jnp.float32, minval=-bound, maxval=bound)

    fwd = jax.jit(functools.partial(upsample_forward, factor=factor))
    out = jax.block_until_ready(fwd(x, w, b))

    assert out.shape == (N, C, H * factor, W * factor), out.shape
    ref = _reference(x, w, b, factor)
    assert bool(jnp.all(jnp.isfinite(out)))
    assert bool(jnp.allclose(out, ref, atol=1e-5, rtol=1e-5))
    print("KERNEL_OK")
</pallas_src>

<mosaic_0001>
module attributes {stable_mosaic.version = 11 : i64} {
  func.func @_pointwise_conv_kernel(%arg0: i32, %arg1: i32, %arg2: memref<1x4x128xf32, #tpu.memory_space<vmem>>, %arg3: memref<16x4xf32, #tpu.memory_space<vmem>>, %arg4: memref<16x1xf32, #tpu.memory_space<vmem>>, %arg5: memref<1x16x128xf32, #tpu.memory_space<vmem>>) attributes {dimension_semantics = [#tpu.dimension_semantics<parallel>, #tpu.dimension_semantics<parallel>], iteration_bounds = array<i64: 2, 2>, scalar_prefetch = 0 : i64, scratch_operands = 0 : i64, tpu.core_type = #tpu.core_type<tc>, window_params = [{transform_indices = @transform_0, window_bounds = array<i64: 1, 4, 128>}, {pipeline_mode = #tpu.pipeline_mode<synchronous>, transform_indices = @transform_1, window_bounds = array<i64: 16, 4>}, {pipeline_mode = #tpu.pipeline_mode<synchronous>, transform_indices = @transform_2, window_bounds = array<i64: 16, 1>}, {transform_indices = @transform_3, window_bounds = array<i64: 1, 16, 128>}]} {
    %c0 = arith.constant 0 : index
    %c0_0 = arith.constant 0 : index
    %0 = vector.load %arg3[%c0, %c0_0] : memref<16x4xf32, #tpu.memory_space<vmem>>, vector<16x4xf32>
    %c0_1 = arith.constant 0 : index
    %c0_2 = arith.constant 0 : index
    %c0_3 = arith.constant 0 : index
    %1 = vector.load %arg2[%c0_1, %c0_2, %c0_3] : memref<1x4x128xf32, #tpu.memory_space<vmem>>, vector<1x4x128xf32>
    %2 = vector.shape_cast %1 : vector<1x4x128xf32> to vector<4x128xf32>
    %cst = arith.constant dense<0.000000e+00> : vector<16x128xf32>
    %3 = tpu.matmul %0, %2, %cst {dimension_numbers = #tpu.dot_dimension_numbers<[1], [0], [0], [1], [0, 0, 1, 1], [], []>} : vector<16x4xf32>, vector<4x128xf32>, vector<16x128xf32> -> vector<16x128xf32>
    %c0_4 = arith.constant 0 : index
    %c0_5 = arith.constant 0 : index
    %4 = vector.load %arg4[%c0_4, %c0_5] : memref<16x1xf32, #tpu.memory_space<vmem>>, vector<16x1xf32>
    %5 = vector.broadcast %4 : vector<16x1xf32> to vector<16x128xf32>
    %6 = arith.addf %3, %5 : vector<16x128xf32>
    %c0_6 = arith.constant 0 : index
    %c0_7 = arith.constant 0 : index
    %c0_8 = arith.constant 0 : index
    %7 = vector.load %arg5[%c0_6, %c0_7, %c0_8] : memref<1x16x128xf32, #tpu.memory_space<vmem>>, vector<1x16x128xf32>
    %8 = vector.shape_cast %7 : vector<1x16x128xf32> to vector<16x128xf32>
    %9 = vector.shape_cast %6 : vector<16x128xf32> to vector<1x16x128xf32>
    tpu.vector_store %arg5[%c0_6, %c0_7, %c0_8], %9 {strides = array<i32>} : memref<1x16x128xf32, #tpu.memory_space<vmem>>, vector<1x16x128xf32>,
    return
  }
  func.func @transform_0(%arg0: i32, %arg1: i32) -> (i32, i32, i32) {
    %c0_i32 = arith.constant 0 : i32
    %c0_i32_0 = arith.constant 0 : i32
    return %arg0, %c0_i32, %arg1 : i32, i32, i32
  }
  func.func @transform_1(%arg0: i32, %arg1: i32) -> (i32, i32) {
    %c0_i32 = arith.constant 0 : i32
    %c0_i32_0 = arith.constant 0 : i32
    %c0_i32_1 = arith.constant 0 : i32
    return %c0_i32, %c0_i32_0 : i32, i32
  }
  func.func @transform_2(%arg0: i32, %arg1: i32) -> (i32, i32) {
    %c0_i32 = arith.constant 0 : i32
    %c0_i32_0 = arith.constant 0 : i32
    %c0_i32_1 = arith.constant 0 : i32
    return %c0_i32, %c0_i32_0 : i32, i32
  }
  func.func @transform_3(%arg0: i32, %arg1: i32) -> (i32, i32, i32) {
    %c0_i32 = arith.constant 0 : i32
    %c0_i32_0 = arith.constant 0 : i32
    return %arg0, %c0_i32, %arg1 : i32, i32, i32
  }
}

</mosaic_0001>

<llo_original>
// kernel: upsample_forward.1
$region0: #{upsample_forward.1}
  #allocation0 [shape = 'u32[]', space=smem, size = 0x4, offset = 0x4, fixed_abs, tag = 'smem constant byte address 0x4 - core index']
  #allocation1 [shape = 'u32[144,128]{1,0:T(1,128)}', space=vmem, size = 0x12000, scoped, tag = 'internal scratch']
  %s0 = inlined_call_operand.vmem [shape: f32[2,4,256], index: 0, kind: input, shape index: {}]
  %s1 = inlined_call_operand.vmem [shape: f32[16,4], index: 1, kind: input, shape index: {}]
  %s2 = inlined_call_operand.vmem [shape: f32[16,1], index: 2, kind: input, shape index: {}]
  %s3 = inlined_call_operand.vmem [shape: f32[2,16,256], index: 3, kind: output, shape index: {}]
  %s4 = sld [smem:[#allocation0]]
  $region79: #{upsample_forward.1} parent=0
    _
  %s6 = ssub.s32 1, %s4
  %s7 = scalar_select 0, %s6, %s4
  $region1: #{upsample_forward.1} parent=0
    #allocation2 [shape = 'u8[16384]{0}', space=vmem, size = 0x4000, scoped, tag = 'output window, operand 0']
    loop: start=0, step=1, limit=6
    $region2: #{upsample_forward.1} parent=1 // loop_pre_header
      _
    $region3: #{upsample_forward.1} parent=1 // loop_header
      %s9 = sphi 0, %s13
      %p10 = scmp.ge.s32.totalorder %s9, 6
      %s16 = sphi 0, %s28
      %s17 = sphi 0, %s24
      %s18 = sphi 0, %s16
      %s19 = sphi 0, %s17
      %s20 = sphi 0, %s18
      %s21 = sphi 0, %s19
      %s33 = sphi 0, %s35
      %s36 = sphi 0, %s33
      %s37 = sphi 0, %s36
      %s53 = sphi 0, %s37
      %s57 = sphi 0, %s57
      %s59 = sphi 0, %s57
      %s60 = sphi 0, %s59
      %s74 = sphi 0, %s60
      %s78 = sphi 0, %s78
      %s80 = sphi 0, %s78
      %s81 = sphi 0, %s80
      %s95 = sphi 0, %s81
      %s103 = sphi 0, %s105
      %s106 = sphi 0, %s103
      %s107 = sphi 0, %s106
      %s123 = sphi 0, %s107
    $region4: #{upsample_forward.1} parent=1 // loop_header_branch
      %12 = sbr.rel (%p10) target = $region8
    $region5: #{upsample_forward.1} parent=1 // loop_body
      %s14 = ssub.s32 %s9, 1
      %s15 = ssub.s32 %s9, 2
      %s22 = sadd.s32 1, %s17
      %p23 = scmp.ge.s32.totalorder %s22, 2
      %s24 = scalar_select %p23, 0, %s22
      %s25 = sadd.s32 1, %s16
      %s26 = scalar_select %p23, %s25, %s16
      %p27 = scmp.ge.s32.totalorder %s26, 2
      %s28 = scalar_select %p27, 0, %s26
      %s29 = ssub.s32 %s16, %s28
      %s30 = ssub.s32 %s17, %s24
      %s31 = sor.u32 %s29, %s30
      %p32 = scmp.eq.s32.totalorder %s31, 0
      %s34 = sadd.s32 %s33, 1
      %s35 = scalar_select %p32, %s33, %s34
      %p38 = pneg %p32
      %p39 = scmp.eq.s32.totalorder %s9, 3
      %p40 = por %p38, %p39
      %p41 = scmp.ne.s32.totalorder %s33, %s36
      %p42 = scmp.eq.s32.totalorder %s9, 0
      %p43 = por %p41, %p42
      %p44 = scmp.ne.s32.totalorder %s33, %s36
      %p45 = scmp.eq.s32.totalorder %s14, 3
      %p46 = por %p44, %p45
      %p47 = scmp.ne.s32.totalorder %s36, %s37
      %p48 = scmp.eq.s32.totalorder %s14, 0
      %p49 = por %p47, %p48
      %p50 = scmp.ne.s32.totalorder %s36, %s37
      %p51 = scmp.eq.s32.totalorder %s15, 3
      %p52 = por %p50, %p51
      %p54 = scmp.ne.s32.totalorder %s37, %s53
      %p55 = scmp.eq.s32.totalorder %s15, 0
      %p56 = por %p54, %p55
      %s58 = sadd.s32 %s57, 1
      %p61 = scmp.eq.s32.totalorder %s9, 3
      %p62 = scmp.ne.s32.totalorder %s57, %s59
      %p63 = scmp.eq.s32.totalorder %s9, 0
      %p64 = por %p62, %p63
      %p65 = scmp.ne.s32.totalorder %s57, %s59
      %p66 = scmp.eq.s32.totalorder %s14, 3
      %p67 = por %p65, %p66
      %p68 = scmp.ne.s32.totalorder %s59, %s60
      %p69 = scmp.eq.s32.totalorder %s14, 0
      %p70 = por %p68, %p69
      %p71 = scmp.ne.s32.totalorder %s59, %s60
      %p72 = scmp.eq.s32.totalorder %s15, 3
      %p73 = por %p71, %p72
      %p75 = scmp.ne.s32.totalorder %s60, %s74
      %p76 = scmp.eq.s32.totalorder %s15, 0
      %p77 = por %p75, %p76
      %s79 = sadd.s32 %s78, 1
      %p82 = scmp.eq.s32.totalorder %s9, 3
      %p83 = scmp.ne.s32.totalorder %s78, %s80
      %p84 = scmp.eq.s32.totalorder %s9, 0
      %p85 = por %p83, %p84
      %p86 = scmp.ne.s32.totalorder %s78, %s80
      %p87 = scmp.eq.s32.totalorder %s14, 3
      %p88 = por %p86, %p87
      %p89 = scmp.ne.s32.totalorder %s80, %s81
      %p90 = scmp.eq.s32.totalorder %s14, 0
      %p91 = por %p89, %p90
      %p92 = scmp.ne.s32.totalorder %s80, %s81
      %p93 = scmp.eq.s32.totalorder %s15, 3
      %p94 = por %p92, %p93
      %p96 = scmp.ne.s32.totalorder %s81, %s95
      %p97 = scmp.eq.s32.totalorder %s15, 0
      %p98 = por %p96, %p97
      %s99 = ssub.s32 %s16, %s28
      %s100 = ssub.s32 %s17, %s24
      %s101 = sor.u32 %s99, %s100
      %p102 = scmp.eq.s32.totalorder %s101, 0
      %s104 = sadd.s32 %s103, 1
      %s105 = scalar_select %p102, %s103, %s104
      %p108 = pneg %p102
      %p109 = scmp.eq.s32.totalorder %s9, 3
      %p110 = por %p108, %p109
      %p111 = scmp.ne.s32.totalorder %s103, %s106
      %p112 = scmp.eq.s32.totalorder %s9, 0
      %p113 = por %p111, %p112
      %p114 = scmp.ne.s32.totalorder %s103, %s106
      %p115 = scmp.eq.s32.totalorder %s14, 3
      %p116 = por %p114, %p115
      %p117 = scmp.ne.s32.totalorder %s106, %s107
      %p118 = scmp.eq.s32.totalorder %s14, 0
      %p119 = por %p117, %p118
      %p120 = scmp.ne.s32.totalorder %s106, %s107
      %p121 = scmp.eq.s32.totalorder %s15, 3
      %p122 = por %p120, %p121
      %p124 = scmp.ne.s32.totalorder %s107, %s123
      %p125 = scmp.eq.s32.totalorder %s15, 0
      %p126 = por %p124, %p125
      %p127 = scmp.le.s32.totalorder 1, %s9
      %p128 = scmp.lt.s32.totalorder %s9, 5
      %p129 = pnand %p127, %p128
      %p130 = pneg %p129
      // Predicated region
      $region9: #{upsample_forward.1} parent=5 // pred_check
        _
      $region10: #{upsample_forward.1} parent=5 // pred_check_branch
        %132 = sbr.rel (%p129) target = $region12
      $region11: #{upsample_forward.1} parent=5 // pred_region
        %s133 = ssub.s32 %s9, 1
        // Predicated region
        $region13: #{upsample_forward.1} parent=11 // pred_check
          %p134 = pneg %p70
        $region14: #{upsample_forward.1} parent=11 // pred_check_branch
          %136 = sbr.rel (%p134) target = $region16
        $region15: #{upsample_forward.1} parent=11 // pred_region
          _
        $region16: #{upsample_forward.1} parent=11 // pred_fallthru
          _
        // Predicated region
        $region17: #{upsample_forward.1} parent=11 // pred_check
          %p137 = pneg %p91
        $region18: #{upsample_forward.1} parent=11 // pred_check_branch
          %139 = sbr.rel (%p137) target = $region20
        $region19: #{upsample_forward.1} parent=11 // pred_region
          _
        $region20: #{upsample_forward.1} parent=11 // pred_fallthru
          _
      $region12: #{upsample_forward.1} parent=5 // pred_fallthru
        _
      %p140 = scmp.lt.s32.totalorder %s9, 4
      // Predicated region
      $region21: #{upsample_forward.1} parent=5 // pred_check
        %p141 = pneg %p140
      $region22: #{upsample_forward.1} parent=5 // pred_check_branch
        %143 = sbr.rel (%p141) target = $region24
      $region23: #{upsample_forward.1} parent=5 // pred_region
        // Predicated region
        $region25: #{upsample_forward.1} parent=23 // pred_check
          %p144 = pneg %p43
        $region26: #{upsample_forward.1} parent=23 // pred_check_branch
          %146 = sbr.rel (%p144) target = $region28
        $region27: #{upsample_forward.1} parent=23 // pred_region
          %p147 = scmp.lt.s32.totalorder %s16, 1
          %s148 = scalar_select %p147, %s16, 1
          %p149 = scmp.lt.s32.totalorder %s17, 1
          %s150 = scalar_select %p149, %s17, 1
          %s151 = smul.addr %s148, 2
          %s152 = sadd.s32 %s150, %s151
          %s153 = smul.addr %s152, 4
          %s154 = scalar_lea.vmem %s0, %s153
        $region28: #{upsample_forward.1} parent=23 // pred_fallthru
          _
      $region24: #{upsample_forward.1} parent=5 // pred_fallthru
        _
      %p155 = scmp.le.s32.totalorder 1, %s9
      %p156 = scmp.lt.s32.totalorder %s9, 5
      %p157 = pnand %p155, %p156
      %p158 = pneg %p157
      // Predicated region
      $region29: #{upsample_forward.1} parent=5 // pred_check
        _
      $region30: #{upsample_forward.1} parent=5 // pred_check_branch
        %160 = sbr.rel (%p157) target = $region32
      $region31: #{upsample_forward.1} parent=5 // pred_region
        %s161 = ssub.s32 %s9, 1
        %p162 = scmp.lt.s32.totalorder %s18, 1
        %s163 = scalar_select %p162, %s18, 1
        %p164 = scmp.lt.s32.totalorder %s19, 1
        %s165 = scalar_select %p164, %s19, 1
        %s166 = smul.addr %s163, 2
        %s167 = sadd.s32 %s165, %s166
        %s168 = smul.addr %s167, 4
        %s169 = scalar_lea.vmem %s0, %s168
        %p170 = pneg %p49
        %p171 = pneg %p46
        %p172 = pneg %p70
        %p173 = pneg %p67
        %p174 = pneg %p91
        %p175 = pneg %p88
        %p176 = pneg %p119
        %p177 = pneg %p116
        %s178 = sand.u32 %s106, 1
        %s179 = sand.u32 %s106, 1
        %s180 = smul.addr %s179, 16
        %s181 = scalar_lea.vmem [#allocation2], %s180
        %p182 = scmp.lt.s32.totalorder %s18, 1
        %s183 = scalar_select %p182, %s18, 1
        %p184 = scmp.lt.s32.totalorder %s19, 1
        %s185 = scalar_select %p184, %s19, 1
        %s186 = smul.addr %s183, 2
        %s187 = sadd.s32 %s185, %s186
        %s188 = smul.addr %s187, 4
        %s189 = scalar_lea.vmem %s0, %s188
        %v190 = vld [vmem:[%s1] sm:$0xff]
        %v191 = vld [vmem:[%s1 + $0x8] sm:$0xff]
        %v192 = vld [vmem:[%s189] sm:$0xf]
        %v193 = vld [vmem:[%s2] sm:$0xff]
        %v194 = vld [vmem:[%s2 + $0x8] sm:$0xff]
        %196 = vset.pattern.permute.xlu0 0
        %197 = vperm.xlu0 %196, %v193
        %v198 = vpop.permute.xlu0 %197
        %201 = vset.pattern.permute.xlu0 0
        %202 = vperm.xlu0 %201, %v194
        %v203 = vpop.permute.xlu0 %202
        %vm205 = vcmask 31744
        %v207 = vsel %vm205, %v190, 0
        %v210 = vsel %vm205, %v191, 0
        %vm212 = vcmask 1043456
        %v214 = vsel %vm212, %v192, 0
        %216 = vmatprep.subr.mxu0 0.0
        %217 = vmatpush1.msra.mxu0 %v214
        %218 = vmatprep.subr.mxu0 0.0
        %219 = vmatpush1.msra.mxu0 0.0
        %220 = vmatprep.subr.mxu0 0.0
        %221 = vmatpush1.msra.mxu0 0.0
        %222 = vmatprep.subr.mxu0 0.0
        %223 = vmatpush1.msra.mxu0 0.0
        %224 = vmatprep.subr.mxu0 0.0
        %225 = vmatpush1.msra.mxu0 0.0
        %226 = vmatprep.subr.mxu0 0.0
        %227 = vmatpush1.msra.mxu0 0.0
        %228 = vmatprep.subr.mxu0 0.0
        %229 = vmatpush1.msra.mxu0 0.0
        %230 = vmatprep.subr.mxu0 0.0
        %231 = vmatpush1.msra.mxu0 0.0
        %232 = vmatprep.subr.mxu0 0.0
        %233 = vmatpush1.msra.mxu0 0.0
        %234 = vmatprep.subr.mxu0 0.0
        %235 = vmatpush1.msra.mxu0 0.0
        %236 = vmatprep.subr.mxu0 0.0
        %237 = vmatpush1.msra.mxu0 0.0
        %238 = vmatprep.subr.mxu0 0.0
        %239 = vmatpush1.msra.mxu0 0.0
        %240 = vmatprep.subr.mxu0 0.0
        %241 = vmatpush1.msra.mxu0 0.0
        %242 = vmatprep.subr.mxu0 0.0
        %243 = vmatpush1.msra.mxu0 0.0
        %244 = vmatprep.subr.mxu0 0.0
        %245 = vmatpush1.msra.mxu0 0.0
        %246 = vmatprep.subr.mxu0 0.0
        %247 = vmatpush1.msra.mxu0 0.0
        %248 = vmatprep.subr.mxu0 0.0
        %249 = vmatpush1.msra.mxu0 0.0
        %250 = vmatprep.subr.mxu0 0.0
        %251 = vmatpush1.msra.mxu0 0.0
        %252 = vmatprep.subr.mxu0 0.0
        %253 = vmatpush1.msra.mxu0 0.0
        %254 = vmatprep.subr.mxu0 0.0
        %255 = vmatpush1.msra.mxu0 0.0
        %256 = vmatprep.subr.mxu0 0.0
        %257 = vmatpush1.msra.mxu0 0.0
        %258 = vmatprep.subr.mxu0 0.0
        %259 = vmatpush1.msra.mxu0 0.0
        %260 = vmatprep.subr.mxu0 0.0
        %261 = vmatpush1.msra.mxu0 0.0
        %262 = vmatprep.subr.mxu0 0.0
        %263 = vmatpush1.msra.mxu0 0.0
        %264 = vmatprep.subr.mxu0 0.0
        %265 = vmatpush1.msra.mxu0 0.0
        %266 = vmatprep.subr.mxu0 0.0
        %267 = vmatpush1.msra.mxu0 0.0
        %268 = vmatprep.subr.mxu0 0.0
        %269 = vmatpush1.msra.mxu0 0.0
        %270 = vmatprep.subr.mxu0 0.0
        %271 = vmatpush1.msra.mxu0 0.0
        %272 = vmatprep.subr.mxu0 0.0
        %273 = vmatpush1.msra.mxu0 0.0
        %274 = vmatprep.subr.mxu0 0.0
        %275 = vmatpush1.msra.mxu0 0.0
        %276 = vmatprep.subr.mxu0 0.0
        %277 = vmatpush1.msra.mxu0 0.0
        %278 = vmatprep.subr.mxu0 0.0
        %279 = vmatpush1.msra.mxu0 0.0
        %280 = vmatprep.mubr.f32.mxu0 0.0
        %281 = vmatmul.mubr.f32.gmra.mrb[0].mxu0 %v207
        %v282 = vpop.f32.mrb[0].mxu0
        %v283 = vadd.f32 %v198, %v282
        %v284 = vpop.f32.mrb[0].mxu0
        %285 = vmatprep.mubr.f32.mxu0 0.0
        %286 = vmatmul.mubr.f32.gmra.mrb[0].mxu0 %v210
        %v287 = vpop.f32.mrb[0].mxu0
        %v288 = vadd.f32 %v203, %v287
        %v289 = vpop.f32.mrb[0].mxu0
        %290 = vdwg.mxu0
        %291 = vst [vmem:[%s181] sm:$0xff] %v283
        %292 = vst [vmem:[%s181 + $0x8] sm:$0xff] %v288
        %s293 = sand.u32 %s106, 1
        %s294 = sand.u32 %s106, 1
        %s295 = smul.addr %s294, 16
        %s296 = scalar_lea.vmem [#allocation2], %s295
        // Predicated region
        $region33: #{upsample_forward.1} parent=31 // pred_check
          %p297 = pneg %p116
        $region34: #{upsample_forward.1} parent=31 // pred_check_branch
          %299 = sbr.rel (%p297) target = $region36
        $region35: #{upsample_forward.1} parent=31 // pred_region
          %s300 = smul.addr %s18, 4
          %s301 = sadd.s32 %s19, %s300
          %s302 = smul.addr %s301, 8
          %s303 = scalar_lea.vmem %s3, %s302
          // Predicated region
          $region37: #{upsample_forward.1} parent=35 // pred_check
            _
          $region38: #{upsample_forward.1} parent=35 // pred_check_branch
            %305 = sbr.rel (0) target = $region40
          $region39: #{upsample_forward.1} parent=35 // pred_region
            // Predicated region
            $region41: #{upsample_forward.1} parent=39 // pred_check
              _
            $region42: #{upsample_forward.1} parent=39 // pred_check_branch
              %307 = sbr.rel (0) target = $region44
            $region43: #{upsample_forward.1} parent=39 // pred_region
              // Predicated region
              $region56: #{upsample_forward.1} parent=43 // pred_check
                _
              $region57: #{upsample_forward.1} parent=43 // pred_check_branch
                %324 = sbr.rel (0) target = $region59
              $region58: #{upsample_forward.1} parent=43 // pred_region
                loop: start=0, step=1, limit=1
                $region60: #{upsample_forward.1} parent=58 // loop_pre_header
                  _
                $region61: #{upsample_forward.1} parent=58 // loop_header
                  %s326 = sphi 0, %s330
                  %p327 = scmp.ge.s32.totalorder %s326, 1
                  %s331 = sphi %s296, %s296
                  %s332 = sphi %s303, %s303
                $region62: #{upsample_forward.1} parent=58 // loop_header_branch
                  %329 = sbr.rel (%p327) target = $region66
                $region63: #{upsample_forward.1} parent=58 // loop_body
                  %v333 = vld [vmem:[%s331] sm:$0xff]
                  %334 = vst [vmem:[%s332] sm:$0xff] %v333
                  %v335 = vld [vmem:[%s331 + $0x8] sm:$0xff]
                  %336 = vst [vmem:[%s332 + $0x10] sm:$0xff] %v335
                $region64: #{upsample_forward.1} parent=58 // loop_footer
                  %s330 = sadd.s32 1, %s326
                $region65: #{upsample_forward.1} parent=58 // loop_footer_branch
                  %325 = sbr.rel target = $region61
                $region66: #{upsample_forward.1} parent=58 // loop_exit
                  _
              $region59: #{upsample_forward.1} parent=43 // pred_fallthru
                _
              // Predicated region
              $region67: #{upsample_forward.1} parent=43 // pred_check
                _
              $region68: #{upsample_forward.1} parent=43 // pred_check_branch
                %338 = sbr.rel target = $region70
              $region69: #{upsample_forward.1} parent=43 // pred_region
                _
              $region70: #{upsample_forward.1} parent=43 // pred_fallthru
                _
            $region44: #{upsample_forward.1} parent=39 // pred_fallthru
              _
            // Predicated region
            $region45: #{upsample_forward.1} parent=39 // pred_check
              _
            $region46: #{upsample_forward.1} parent=39 // pred_check_branch
              %309 = sbr.rel target = $region48
            $region47: #{upsample_forward.1} parent=39 // pred_region
              loop: start=0, step=1, limit=1
              $region49: #{upsample_forward.1} parent=47 // loop_pre_header
                _
              $region50: #{upsample_forward.1} parent=47 // loop_header
                %s312 = sphi 0, %s316
                %p313 = scmp.ge.s32.totalorder %s312, 1
                %s317 = sphi %s296, %s296
                %s318 = sphi %s303, %s303
              $region51: #{upsample_forward.1} parent=47 // loop_header_branch
                %315 = sbr.rel (%p313) target = $region55
              $region52: #{upsample_forward.1} parent=47 // loop_body
                %v319 = vld [vmem:[%s317] sm:$0xff]
                %320 = vst [vmem:[%s318] sm:$0xff] %v319
                %v321 = vld [vmem:[%s317 + $0x8] sm:$0xff]
                %322 = vst [vmem:[%s318 + $0x10] sm:$0xff] %v321
              $region53: #{upsample_forward.1} parent=47 // loop_footer
                %s316 = sadd.s32 1, %s312
              $region54: #{upsample_forward.1} parent=47 // loop_footer_branch
                %311 = sbr.rel target = $region50
              $region55: #{upsample_forward.1} parent=47 // loop_exit
                _
            $region48: #{upsample_forward.1} parent=39 // pred_fallthru
              _
          $region40: #{upsample_forward.1} parent=35 // pred_fallthru
            _
          %339 = vnop
        $region36: #{upsample_forward.1} parent=31 // pred_fallthru
          _
      $region32: #{upsample_forward.1} parent=5 // pred_fallthru
        _
      %p340 = scmp.le.s32.totalorder 2, %s9
      // Predicated region
      $region71: #{upsample_forward.1} parent=5 // pred_check
        %p341 = pneg %p340
      $region72: #{upsample_forward.1} parent=5 // pred_check_branch
        %343 = sbr.rel (%p341) target = $region74
      $region73: #{upsample_forward.1} parent=5 // pred_region
        %s344 = ssub.s32 %s9, 2
        // Predicated region
        $region75: #{upsample_forward.1} parent=73 // pred_check
          %p345 = pneg %p122
        $region76: #{upsample_forward.1} parent=73 // pred_check_branch
          %347 = sbr.rel (%p345) target = $region78
        $region77: #{upsample_forward.1} parent=73 // pred_region
          %s348 = sand.u32 %s107, 1
          %s349 = sand.u32 %s107, 1
          %s350 = smul.addr %s349, 16
          %s351 = scalar_lea.vmem [#allocation2], %s350
        $region78: #{upsample_forward.1} parent=73 // pred_fallthru
          _
      $region74: #{upsample_forward.1} parent=5 // pred_fallthru
        _
    $region6: #{upsample_forward.1} parent=1 // loop_footer
      %s13 = sadd.s32 1, %s9
    $region7: #{upsample_forward.1} parent=1 // loop_footer_branch
      %8 = sbr.rel target = $region3
    $region8: #{upsample_forward.1} parent=1 // loop_exit
      _

</llo_original>
